<compile_context>
chip_gen: v6e
topology: v6e:2x2x1
jax: 0.10.0
libtpu: 0.0.40
codegen_flags: <defaults>
</compile_context>

<pallas_src>
import jax
import jax.numpy as jnp
from jax import lax
from jax.experimental import pallas as pl
from jax.experimental.pallas import tpu as pltpu

BN_EPS = 1e-5


def _make_kernel(tile_n, d_pad, keep_threshold, inv_keep):
    """Bake the static dropout constants into the kernel body."""

    def kernel(seed_ref, x_ref, w_ref, b_ref, g_ref, be_ref, out_ref):
        j = pl.program_id(0)

        # ---- Linear: z = x @ W^T + b  (bf16 MXU inputs, f32 accumulation) ----
        z = lax.dot_general(
            x_ref[...], w_ref[...],
            dimension_numbers=(((1,), (1,)), ((), ())),
            preferred_element_type=jnp.float32)          # [B, TN] f32
        z = z + b_ref[...]                               # b_ref is [1, TN]

        # ---- BatchNorm1d (training: biased batch stats), one-pass form ----
        m1 = jnp.mean(z, axis=0, keepdims=True)
        m2 = jnp.mean(z * z, axis=0, keepdims=True)
        var = m2 - m1 * m1
        inv_std = lax.rsqrt(var + BN_EPS)

        # Fold BN affine + dropout scale into one per-column scale/shift.
        # ReLU commutes with the positive scale 1/(1-p).
        a = g_ref[...] * inv_std * inv_keep                      # (1, TN)
        c = (be_ref[...] - g_ref[...] * inv_std * m1) * inv_keep  # (1, TN)
        y = jnp.maximum(z * a + c, 0.0)

        # ---- Dropout: counter-based hash, integer-domain keep test ----
        rows = lax.broadcasted_iota(jnp.int32, y.shape, 0).astype(jnp.uint32)
        cols = lax.broadcasted_iota(jnp.int32, y.shape, 1).astype(jnp.uint32)
        col0 = (j * tile_n).astype(jnp.uint32)
        ctr = rows * jnp.uint32(d_pad) + (cols + col0)
        h = ctr ^ (seed_ref[0].astype(jnp.uint32) * jnp.uint32(0x9E3779B9))
        # lowbias32 mix
        h = h ^ (h >> 16)
        h = h * jnp.uint32(0x7FEB352D)
        h = h ^ (h >> 15)
        h = h * jnp.uint32(0x846CA68B)
        h = h ^ (h >> 16)
        keep = h >= jnp.uint32(keep_threshold)

        out_ref[...] = jnp.where(keep, y, 0.0).astype(out_ref.dtype)

    return kernel


def supervised_encoder(x, weight, bias, gamma, beta, *, drop_rate, seed,
                       tile_n=128):
    """x: [B, D_in]; weight: [D_out, D_in]; bias/gamma/beta: [D_out]."""
    assert 0.0 <= drop_rate < 1.0, "drop_rate must be in [0, 1)"
    B, d_in = x.shape
    d_out = weight.shape[0]

    # Pad D_out to a lane-dense multiple of the tile (unmasked vector stores).
    d_pad = ((d_out + tile_n - 1) // tile_n) * tile_n
    pad = d_pad - d_out

    x_bf = jnp.asarray(x, jnp.bfloat16)                       # MXU-native input
    w_bf = jnp.asarray(weight, jnp.bfloat16)                  # [D_out, D_in], NO transpose
    if pad:
        w_bf = jnp.pad(w_bf, ((0, pad), (0, 0)))
    b2 = jnp.pad(jnp.asarray(bias, jnp.float32), (0, pad)).reshape(1, d_pad)
    g2 = jnp.pad(jnp.asarray(gamma, jnp.float32), (0, pad),
                 constant_values=1.0).reshape(1, d_pad)
    be2 = jnp.pad(jnp.asarray(beta, jnp.float32), (0, pad)).reshape(1, d_pad)
    seed_arr = jnp.array([seed], dtype=jnp.int32)

    # Static dropout constants baked into the kernel.
    keep_threshold = min(int(round(drop_rate * 4294967296.0)), 4294967295)
    inv_keep = float(1.0 / (1.0 - drop_rate))

    kernel = _make_kernel(tile_n, d_pad, keep_threshold, inv_keep)
    n_tiles = d_pad // tile_n

    grid_spec = pltpu.PrefetchScalarGridSpec(
        num_scalar_prefetch=1,                 # seed lives in SMEM
        grid=(n_tiles,),
        in_specs=[
            pl.BlockSpec((B, d_in), lambda j, seed: (0, 0)),       # x: resident
            pl.BlockSpec((tile_n, d_in), lambda j, seed: (j, 0)),  # weight tile
            pl.BlockSpec((1, tile_n), lambda j, seed: (0, j)),     # bias
            pl.BlockSpec((1, tile_n), lambda j, seed: (0, j)),     # gamma
            pl.BlockSpec((1, tile_n), lambda j, seed: (0, j)),     # beta
        ],
        out_specs=pl.BlockSpec((B, tile_n), lambda j, seed: (0, j)),
    )

    out = pl.pallas_call(
        kernel,
        out_shape=jax.ShapeDtypeStruct((B, d_pad), jnp.float32),
        grid_spec=grid_spec,
        compiler_params=pltpu.CompilerParams(
            dimension_semantics=("parallel",)),   # feature tiles are independent
    )(seed_arr, x_bf, w_bf, b2, g2, be2)

    return out[:, :d_out] if pad else out


if __name__ == "__main__":
    # Small, deterministic example consistent with the module:
    # input_dim=64, output_dim=128, drop_rate=0.3, batch=16.
    B, D_IN, D_OUT = 16, 64, 128
    DROP_RATE = 0.3

    key = jax.random.PRNGKey(0)
    kx, kw, kb = jax.random.split(key, 3)

    x = jax.random.normal(kx, (B, D_IN), dtype=jnp.float32)

    # Deterministic parameter init (mimics nn.Linear's U(-1/sqrt(fan_in), ...)).
    bound = 1.0 / jnp.sqrt(jnp.float32(D_IN))
    weight = jax.random.uniform(kw, (D_OUT, D_IN), jnp.float32, -bound, bound)
    bias = jax.random.uniform(kb, (D_OUT,), jnp.float32, -bound, bound)
    gamma = jnp.ones((D_OUT,), jnp.float32)   # BatchNorm1d default weight
    beta = jnp.zeros((D_OUT,), jnp.float32)   # BatchNorm1d default bias

    out = supervised_encoder(x, weight, bias, gamma, beta,
                             drop_rate=DROP_RATE, seed=1234)
    jax.block_until_ready(out)

    assert out.shape == (B, D_OUT)
    assert bool(jnp.all(jnp.isfinite(out)))
    print("KERNEL_OK")
</pallas_src>

<mosaic_0001>
module attributes {stable_mosaic.version = 11 : i64} {
  func.func @kernel(%arg0: i32, %arg1: memref<1xi32, #tpu.memory_space<smem>>, %arg2: memref<16x64xbf16, #tpu.memory_space<vmem>>, %arg3: memref<128x64xbf16, #tpu.memory_space<vmem>>, %arg4: memref<1x128xf32, #tpu.memory_space<vmem>>, %arg5: memref<1x128xf32, #tpu.memory_space<vmem>>, %arg6: memref<1x128xf32, #tpu.memory_space<vmem>>, %arg7: memref<16x128xf32, #tpu.memory_space<vmem>>) attributes {dimension_semantics = [#tpu.dimension_semantics<parallel>], iteration_bounds = array<i64: 1>, scalar_prefetch = 1 : i64, scratch_operands = 0 : i64, tpu.core_type = #tpu.core_type<tc>, window_params = [{pipeline_mode = #tpu.pipeline_mode<synchronous>, transform_indices = @transform_0, window_bounds = array<i64: 16, 64>}, {transform_indices = @transform_1, window_bounds = array<i64: 128, 64>}, {transform_indices = @transform_2, window_bounds = array<i64: 1, 128>}, {transform_indices = @transform_3, window_bounds = array<i64: 1, 128>}, {transform_indices = @transform_4, window_bounds = array<i64: 1, 128>}, {transform_indices = @transform_5, window_bounds = array<i64: 16, 128>}]} {
    %c0 = arith.constant 0 : index
    %c0_0 = arith.constant 0 : index
    %0 = vector.load %arg2[%c0, %c0_0] : memref<16x64xbf16, #tpu.memory_space<vmem>>, vector<16x64xbf16>
    %c0_1 = arith.constant 0 : index
    %c0_2 = arith.constant 0 : index
    %1 = vector.load %arg3[%c0_1, %c0_2] : memref<128x64xbf16, #tpu.memory_space<vmem>>, vector<128x64xbf16>
    %cst = arith.constant dense<0.000000e+00> : vector<16x128xf32>
    %2 = tpu.matmul %0, %1, %cst {dimension_numbers = #tpu.dot_dimension_numbers<[1], [1], [0], [0], [0, 0, 1, 0], [], []>} : vector<16x64xbf16>, vector<128x64xbf16>, vector<16x128xf32> -> vector<16x128xf32>
    %c0_3 = arith.constant 0 : index
    %c0_4 = arith.constant 0 : index
    %3 = vector.load %arg4[%c0_3, %c0_4] : memref<1x128xf32, #tpu.memory_space<vmem>>, vector<1x128xf32>
    %4 = vector.broadcast %3 : vector<1x128xf32> to vector<16x128xf32>
    %5 = arith.addf %2, %4 : vector<16x128xf32>
    %cst_5 = arith.constant dense<0.000000e+00> : vector<128xf32>
    %6 = vector.multi_reduction <add>, %5, %cst_5 [0] : vector<16x128xf32> to vector<128xf32>
    %7 = vector.shape_cast %6 : vector<128xf32> to vector<1x128xf32>
    %cst_6 = arith.constant 1.600000e+01 : f32
    %8 = vector.broadcast %cst_6 : f32 to vector<1x128xf32>
    %9 = arith.divf %7, %8 : vector<1x128xf32>
    %10 = arith.mulf %5, %5 : vector<16x128xf32>
    %cst_7 = arith.constant dense<0.000000e+00> : vector<128xf32>
    %11 = vector.multi_reduction <add>, %10, %cst_7 [0] : vector<16x128xf32> to vector<128xf32>
    %12 = vector.shape_cast %11 : vector<128xf32> to vector<1x128xf32>
    %cst_8 = arith.constant 1.600000e+01 : f32
    %13 = vector.broadcast %cst_8 : f32 to vector<1x128xf32>
    %14 = arith.divf %12, %13 : vector<1x128xf32>
    %15 = arith.mulf %9, %9 : vector<1x128xf32>
    %16 = arith.subf %14, %15 : vector<1x128xf32>
    %cst_9 = arith.constant 9.99999974E-6 : f32
    %17 = vector.broadcast %cst_9 : f32 to vector<1x128xf32>
    %18 = arith.addf %16, %17 : vector<1x128xf32>
    %19 = math.rsqrt %18 : vector<1x128xf32>
    %c0_10 = arith.constant 0 : index
    %c0_11 = arith.constant 0 : index
    %20 = vector.load %arg5[%c0_10, %c0_11] : memref<1x128xf32, #tpu.memory_space<vmem>>, vector<1x128xf32>
    %21 = arith.mulf %20, %19 : vector<1x128xf32>
    %cst_12 = arith.constant 1.42857146 : f32
    %22 = vector.broadcast %cst_12 : f32 to vector<1x128xf32>
    %23 = arith.mulf %21, %22 : vector<1x128xf32>
    %c0_13 = arith.constant 0 : index
    %c0_14 = arith.constant 0 : index
    %24 = vector.load %arg6[%c0_13, %c0_14] : memref<1x128xf32, #tpu.memory_space<vmem>>, vector<1x128xf32>
    %c0_15 = arith.constant 0 : index
    %c0_16 = arith.constant 0 : index
    %25 = vector.load %arg5[%c0_15, %c0_16] : memref<1x128xf32, #tpu.memory_space<vmem>>, vector<1x128xf32>
    %26 = arith.mulf %25, %19 : vector<1x128xf32>
    %27 = arith.mulf %26, %9 : vector<1x128xf32>
    %28 = arith.subf %24, %27 : vector<1x128xf32>
    %cst_17 = arith.constant 1.42857146 : f32
    %29 = vector.broadcast %cst_17 : f32 to vector<1x128xf32>
    %30 = arith.mulf %28, %29 : vector<1x128xf32>
    %31 = vector.broadcast %23 : vector<1x128xf32> to vector<16x128xf32>
    %32 = arith.mulf %5, %31 : vector<16x128xf32>
    %33 = vector.broadcast %30 : vector<1x128xf32> to vector<16x128xf32>
    %34 = arith.addf %32, %33 : vector<16x128xf32>
    %cst_18 = arith.constant 0.000000e+00 : f32
    %35 = vector.broadcast %cst_18 : f32 to vector<16x128xf32>
    %36 = arith.maximumf %34, %35 : vector<16x128xf32>
    %37 = tpu.iota {dimensions = array<i32: 0>} : vector<16x128xi32>
    %38 = tpu.iota {dimensions = array<i32: 1>} : vector<16x128xi32>
    %c128_i32 = arith.constant 128 : i32
    %39 = arith.muli %arg0, %c128_i32 : i32
    %c128_i32_19 = arith.constant 128 : i32
    %40 = vector.broadcast %c128_i32_19 : i32 to vector<16x128xi32>
    %41 = arith.muli %37, %40 : vector<16x128xi32>
    %42 = vector.broadcast %39 : i32 to vector<16x128xi32>
    %43 = arith.addi %38, %42 : vector<16x128xi32>
    %44 = arith.addi %41, %43 : vector<16x128xi32>
    %c0_20 = arith.constant 0 : index
    %45 = memref.load %arg1[%c0_20] : memref<1xi32, #tpu.memory_space<smem>>
    %c-1640531527_i32 = arith.constant -1640531527 : i32
    %46 = arith.muli %45, %c-1640531527_i32 : i32
    %47 = vector.broadcast %46 : i32 to vector<16x128xi32>
    %48 = arith.xori %44, %47 : vector<16x128xi32>
    %c16_i32 = arith.constant 16 : i32
    %49 = vector.broadcast %c16_i32 : i32 to vector<16x128xi32>
    %50 = arith.shrui %48, %49 : vector<16x128xi32>
    %51 = arith.xori %48, %50 : vector<16x128xi32>
    %c2146121005_i32 = arith.constant 2146121005 : i32
    %52 = vector.broadcast %c2146121005_i32 : i32 to vector<16x128xi32>
    %53 = arith.muli %51, %52 : vector<16x128xi32>
    %c15_i32 = arith.constant 15 : i32
    %54 = vector.broadcast %c15_i32 : i32 to vector<16x128xi32>
    %55 = arith.shrui %53, %54 : vector<16x128xi32>
    %56 = arith.xori %53, %55 : vector<16x128xi32>
    %c-2073254261_i32 = arith.constant -2073254261 : i32
    %57 = vector.broadcast %c-2073254261_i32 : i32 to vector<16x128xi32>
    %58 = arith.muli %56, %57 : vector<16x128xi32>
    %c16_i32_21 = arith.constant 16 : i32
    %59 = vector.broadcast %c16_i32_21 : i32 to vector<16x128xi32>
    %60 = arith.shrui %58, %59 : vector<16x128xi32>
    %61 = arith.xori %58, %60 : vector<16x128xi32>
    %c1288490189_i32 = arith.constant 1288490189 : i32
    %62 = vector.broadcast %c1288490189_i32 : i32 to vector<16x128xi32>
    %63 = arith.cmpi uge, %61, %62 : vector<16x128xi32>
    %cst_22 = arith.constant 0.000000e+00 : f32
    %64 = vector.broadcast %cst_22 : f32 to vector<16x128xf32>
    %65 = arith.select %63, %36, %64 : vector<16x128xi1>, vector<16x128xf32>
    %c0_23 = arith.constant 0 : index
    %c0_24 = arith.constant 0 : index
    %66 = vector.load %arg7[%c0_23, %c0_24] : memref<16x128xf32, #tpu.memory_space<vmem>>, vector<16x128xf32>
    tpu.vector_store %arg7[%c0_23, %c0_24], %65 {strides = array<i32>} : memref<16x128xf32, #tpu.memory_space<vmem>>, vector<16x128xf32>,
    return
  }
  func.func @transform_0(%arg0: i32, %arg1: memref<1xi32, #tpu.memory_space<smem>>) -> (i32, i32) {
    %c0_i32 = arith.constant 0 : i32
    %c0_i32_0 = arith.constant 0 : i32
    %c0_i32_1 = arith.constant 0 : i32
    return %c0_i32, %c0_i32_0 : i32, i32
  }
  func.func @transform_1(%arg0: i32, %arg1: memref<1xi32, #tpu.memory_space<smem>>) -> (i32, i32) {
    %c0_i32 = arith.constant 0 : i32
    %c0_i32_0 = arith.constant 0 : i32
    return %arg0, %c0_i32 : i32, i32
  }
  func.func @transform_2(%arg0: i32, %arg1: memref<1xi32, #tpu.memory_space<smem>>) -> (i32, i32) {
    %c0_i32 = arith.constant 0 : i32
    %c0_i32_0 = arith.constant 0 : i32
    return %c0_i32, %arg0 : i32, i32
  }
  func.func @transform_3(%arg0: i32, %arg1: memref<1xi32, #tpu.memory_space<smem>>) -> (i32, i32) {
    %c0_i32 = arith.constant 0 : i32
    %c0_i32_0 = arith.constant 0 : i32
    return %c0_i32, %arg0 : i32, i32
  }
  func.func @transform_4(%arg0: i32, %arg1: memref<1xi32, #tpu.memory_space<smem>>) -> (i32, i32) {
    %c0_i32 = arith.constant 0 : i32
    %c0_i32_0 = arith.constant 0 : i32
    return %c0_i32, %arg0 : i32, i32
  }
  func.func @transform_5(%arg0: i32, %arg1: memref<1xi32, #tpu.memory_space<smem>>) -> (i32, i32) {
    %c0_i32 = arith.constant 0 : i32
    %c0_i32_0 = arith.constant 0 : i32
    return %c0_i32, %arg0 : i32, i32
  }
}

</mosaic_0001>

<llo_original>
// kernel: tpu_custom_call.1
$region0: #{tpu_custom_call.1}
  #allocation0 [shape = 'u32[]', space=smem, size = 0x4, offset = 0x4, fixed_abs, tag = 'smem constant byte address 0x4 - core index']
  #allocation1 [shape = 'u32[144,128]{1,0:T(1,128)}', space=vmem, size = 0x12000, scoped, tag = 'internal scratch']
  #allocation2 [shape = 's32[1]{0}', space=sflag, size = 0x4, scoped, tag = 'scoped memory for tpu_custom_call.1']
  #allocation3 [shape = 's32[1]{0:T(128)S(6)}', space=smem, size = 0x200, scoped, tag = 'prefetched SMEM operand 0']
  %s0 = inlined_call_operand.<no memory space> [shape: s32[1], index: 0, kind: input, shape index: {}]
  %s1 = inlined_call_operand.vmem [shape: bf16[16,64], index: 1, kind: input, shape index: {}]
  %s2 = inlined_call_operand.vmem [shape: bf16[128,64], index: 2, kind: input, shape index: {}]
  %s3 = inlined_call_operand.vmem [shape: f32[1,128], index: 3, kind: input, shape index: {}]
  %s4 = inlined_call_operand.vmem [shape: f32[1,128], index: 4, kind: input, shape index: {}]
  %s5 = inlined_call_operand.vmem [shape: f32[1,128], index: 5, kind: input, shape index: {}]
  %s6 = inlined_call_operand.hbm [shape: f32[16,128], index: 6, kind: output, shape index: {}]
  %s7 = sld [smem:[#allocation0]]
  $region30: #{tpu_custom_call.1} parent=0
    _
  %s9 = ssub.s32 1, %s7
  %s10 = scalar_select 0, %s9, %s7
  %11 = sst [smem:[#allocation3]] %s0
  $region1: #{tpu_custom_call.1} parent=0
    #allocation4 [shape = 'u8[8192]{0}', space=vmem, size = 0x2000, scoped, tag = 'output window, operand 0, single buffered']
    #allocation5 [shape = 's32[1]{0}', space=sflag, size = 0x4, scoped, tag = 'scoped memory for tpu_custom_call.1']
    %12 = vsyncpa [#allocation5], 0
    // Predicated region
    $region2: #{tpu_custom_call.1} parent=1 // pred_check
      _
    $region3: #{tpu_custom_call.1} parent=1 // pred_check_branch
      %14 = sbr.rel (0) target = $region5
    $region4: #{tpu_custom_call.1} parent=1 // pred_region
      _
    $region5: #{tpu_custom_call.1} parent=1 // pred_fallthru
      _
    // Predicated region
    $region6: #{tpu_custom_call.1} parent=1 // pred_check
      _
    $region7: #{tpu_custom_call.1} parent=1 // pred_check_branch
      %16 = sbr.rel (0) target = $region9
    $region8: #{tpu_custom_call.1} parent=1 // pred_region
      _
    $region9: #{tpu_custom_call.1} parent=1 // pred_fallthru
      _
    // Predicated region
    $region10: #{tpu_custom_call.1} parent=1 // pred_check
      _
    $region11: #{tpu_custom_call.1} parent=1 // pred_check_branch
      %18 = sbr.rel (0) target = $region13
    $region12: #{tpu_custom_call.1} parent=1 // pred_region
      _
    $region13: #{tpu_custom_call.1} parent=1 // pred_fallthru
      _
    // Predicated region
    $region14: #{tpu_custom_call.1} parent=1 // pred_check
      _
    $region15: #{tpu_custom_call.1} parent=1 // pred_check_branch
      %20 = sbr.rel (0) target = $region17
    $region16: #{tpu_custom_call.1} parent=1 // pred_region
      _
    $region17: #{tpu_custom_call.1} parent=1 // pred_fallthru
      _
    // Predicated region
    $region18: #{tpu_custom_call.1} parent=1 // pred_check
      _
    $region19: #{tpu_custom_call.1} parent=1 // pred_check_branch
      %22 = sbr.rel (0) target = $region21
    $region20: #{tpu_custom_call.1} parent=1 // pred_region
      _
    $region21: #{tpu_custom_call.1} parent=1 // pred_fallthru
      _
    %v24 = vld [vmem:[%s1] sm:$0xf]
    %v25 = vld [vmem:[%s1 + $0x4] sm:$0xf]
    %v26 = vld [vmem:[%s2] sm:$0xf]
    %v27 = vld [vmem:[%s2 + $0x4] sm:$0xf]
    %v28 = vld [vmem:[%s2 + $0x8] sm:$0xf]
    %v29 = vld [vmem:[%s2 + $0xc] sm:$0xf]
    %v30 = vld [vmem:[%s2 + $0x10] sm:$0xf]
    %v31 = vld [vmem:[%s2 + $0x14] sm:$0xf]
    %v32 = vld [vmem:[%s2 + $0x18] sm:$0xf]
    %v33 = vld [vmem:[%s2 + $0x1c] sm:$0xf]
    %v34 = vld [vmem:[%s2 + $0x20] sm:$0xf]
    %v35 = vld [vmem:[%s2 + $0x24] sm:$0xf]
    %v36 = vld [vmem:[%s2 + $0x28] sm:$0xf]
    %v37 = vld [vmem:[%s2 + $0x2c] sm:$0xf]
    %v38 = vld [vmem:[%s2 + $0x30] sm:$0xf]
    %v39 = vld [vmem:[%s2 + $0x34] sm:$0xf]
    %v40 = vld [vmem:[%s2 + $0x38] sm:$0xf]
    %v41 = vld [vmem:[%s2 + $0x3c] sm:$0xf]
    %v42 = vld [vmem:[%s3] sm:$0x1]
    %v44 = vlaneseq
    %v45 = vshrl.u32 %v44, 7
    %v46 = vsub.s32 0, %v45
    %v47 = vrot.slane %v42, %v46
    %v51 = vunpack.c.l.b16 %v24
    %v52 = vunpack.c.l.b16 %v25
    %v53 = vpack.c.b16 %v52, %v51
    %v70 = vunpack.c.l.b16 %v26
    %v71 = vunpack.c.l.b16 %v27
    %v72 = vunpack.c.l.b16 %v28
    %v73 = vunpack.c.l.b16 %v29
    %v74 = vunpack.c.l.b16 %v30
    %v75 = vunpack.c.l.b16 %v31
    %v76 = vunpack.c.l.b16 %v32
    %v77 = vunpack.c.l.b16 %v33
    %v78 = vunpack.c.l.b16 %v34
    %v79 = vunpack.c.l.b16 %v35
    %v80 = vunpack.c.l.b16 %v36
    %v81 = vunpack.c.l.b16 %v37
    %v82 = vunpack.c.l.b16 %v38
    %v83 = vunpack.c.l.b16 %v39
    %v84 = vunpack.c.l.b16 %v40
    %v85 = vunpack.c.l.b16 %v41
    %v86 = vpack.c.b16 %v71, %v70
    %v87 = vpack.c.b16 %v73, %v72
    %v88 = vpack.c.b16 %v75, %v74
    %v89 = vpack.c.b16 %v77, %v76
    %v90 = vpack.c.b16 %v79, %v78
    %v91 = vpack.c.b16 %v81, %v80
    %v92 = vpack.c.b16 %v83, %v82
    %v93 = vpack.c.b16 %v85, %v84
    %vm94 = vcmask 523264
    %v96 = vsel %vm94, %v53, 0
    %v99 = vsel %vm94, %v86, 0
    %v102 = vsel %vm94, %v87, 0
    %v105 = vsel %vm94, %v88, 0
    %v108 = vsel %vm94, %v89, 0
    %v111 = vsel %vm94, %v90, 0
    %v114 = vsel %vm94, %v91, 0
    %v117 = vsel %vm94, %v92, 0
    %v120 = vsel %vm94, %v93, 0
    %122 = vmatprep.subr.bf16.mxu0 0
    %123 = vmatpush1.bf16.xpose.msra.mxu0 %v120
    %124 = vmatprep.subr.bf16.mxu0 0
    %125 = vmatpush1.bf16.xpose.msra.mxu0 %v117
    %126 = vmatprep.subr.bf16.mxu0 0
    %127 = vmatpush1.bf16.xpose.msra.mxu0 %v114
    %128 = vmatprep.subr.bf16.mxu0 0
    %129 = vmatpush1.bf16.xpose.msra.mxu0 %v111
    %130 = vmatprep.subr.bf16.mxu0 0
    %131 = vmatpush1.bf16.xpose.msra.mxu0 %v108
    %132 = vmatprep.subr.bf16.mxu0 0
    %133 = vmatpush1.bf16.xpose.msra.mxu0 %v105
    %134 = vmatprep.subr.bf16.mxu0 0
    %135 = vmatpush1.bf16.xpose.msra.mxu0 %v102
    %136 = vmatprep.subr.bf16.mxu0 0
    %137 = vmatpush1.bf16.xpose.msra.mxu0 %v99
    %138 = vmatprep.subr.bf16.mxu0 0
    %139 = vmatpush2.bf16.xpose.msra.mxu0 0
    %140 = vmatprep.subr.bf16.mxu0 0
    %141 = vmatpush2.bf16.xpose.msra.mxu0 0
    %142 = vmatprep.subr.bf16.mxu0 0
    %143 = vmatpush2.bf16.xpose.msra.mxu0 0
    %144 = vmatprep.subr.bf16.mxu0 0
    %145 = vmatpush2.bf16.xpose.msra.mxu0 0
    %146 = vmatprep.subr.bf16.mxu0 0
    %147 = vmatpush2.bf16.xpose.msra.mxu0 0
    %148 = vmatprep.subr.bf16.mxu0 0
    %149 = vmatpush2.bf16.xpose.msra.mxu0 0
    %150 = vmatprep.subr.bf16.mxu0 0
    %151 = vmatpush2.bf16.xpose.msra.mxu0 0
    %152 = vmatprep.subr.bf16.mxu0 0
    %153 = vmatpush2.bf16.xpose.msra.mxu0 0
    %154 = vmatprep.mubr.bf16.mxu0 0
    %155 = vmatmul.mubr.bf16.gmra.mxu0 %v96
    %v156 = vpop.f32.mrf.mxu0
    %v157 = vadd.f32 %v47, %v156
    %v158 = vpop.f32.mrf.mxu0
    %v159 = vpop.f32.mrf.mxu0
    %v160 = vadd.f32 %v47, %v159
    %v161 = vpop.f32.mrf.mxu0
    %162 = vdwg.mxu0
    %v163 = vadd.f32 %v157, %v160
    %v164 = vrot.slane %v163, 4
    %v165 = vadd.f32 %v163, %v164
    %v166 = vrot.slane %v165, 2
    %v167 = vadd.f32 %v165, %v166
    %v168 = vrot.slane %v167, 1
    %v169 = vadd.f32 %v167, %v168
    %v170 = vrcp.pop 16.0
    %v171 = vmul.f32 %v169, %v170
    %v172 = vmul.f32 %v157, %v157
    %v173 = vmul.f32 %v160, %v160
    %v174 = vadd.f32 %v172, %v173
    %v175 = vrot.slane %v174, 4
    %v176 = vadd.f32 %v174, %v175
    %v177 = vrot.slane %v176, 2
    %v178 = vadd.f32 %v176, %v177
    %v179 = vrot.slane %v178, 1
    %v180 = vadd.f32 %v178, %v179
    %v181 = vmul.f32 %v180, %v170
    %v182 = vmul.f32 %v171, %v171
    %v183 = vsub.f32 %v181, %v182
    %v184 = vadd.f32 %v183, 1e-05
    %v185 = vrsqrt.pop %v184
    %v186 = vld [vmem:[%s4] sm:$0x1]
    %v187 = vmul.f32 %v186, %v185
    %v188 = vmul.f32 %v187, 1.4285715
    %v189 = vld [vmem:[%s5] sm:$0x1]
    %v190 = vmul.f32 %v187, %v171
    %v191 = vsub.f32 %v189, %v190
    %v192 = vmul.f32 %v191, 1.4285715
    %v194 = vlaneseq
    %v195 = vshrl.u32 %v194, 7
    %v196 = vsub.s32 0, %v195
    %v197 = vrot.slane %v188, %v196
    %v199 = vmul.f32 %v157, %v197
    %v200 = vmul.f32 %v160, %v197
    %v202 = vlaneseq
    %v203 = vshrl.u32 %v202, 7
    %v204 = vsub.s32 0, %v203
    %v205 = vrot.slane %v192, %v204
    %v207 = vadd.f32 %v199, %v205
    %v208 = vadd.f32 %v200, %v205
    %v209 = vmax.f32 %v207, 0.0
    %v210 = vmax.f32 %v208, 0.0
    %v211 = vlaneseq
    %v212 = vshrl.u32 %v211, 7
    %v213 = vadd.s32 %v212, 8
    %v214 = vlaneseq
    %v215 = vand.u32 %v214, 127
    %s216 = smul.u32 0, 128
    %v217 = vmul.u32 %v212, 128
    %v218 = vmul.u32 %v213, 128
    %v219 = vstv %s216
    %v220 = vadd.s32 %v215, %v219
    %v221 = vadd.s32 %v217, %v220
    %v222 = vadd.s32 %v218, %v220
    %s223 = sld [smem:[#allocation3]]
    %s224 = smul.u32 %s223, 2654435769
    %v225 = vstv %s224
    %v226 = vxor.u32 %v221, %v225
    %v227 = vxor.u32 %v222, %v225
    %v228 = vshrl.u32 %v226, 16
    %v229 = vshrl.u32 %v227, 16
    %v230 = vxor.u32 %v226, %v228
    %v231 = vxor.u32 %v227, %v229
    %v232 = vmul.u32 %v230, 2146121005
    %v233 = vmul.u32 %v231, 2146121005
    %v234 = vshrl.u32 %v232, 15
    %v235 = vshrl.u32 %v233, 15
    %v236 = vxor.u32 %v232, %v234
    %v237 = vxor.u32 %v233, %v235
    %v238 = vmul.u32 %v236, 2221713035
    %v239 = vmul.u32 %v237, 2221713035
    %v240 = vshrl.u32 %v238, 16
    %v241 = vshrl.u32 %v239, 16
    %v242 = vxor.u32 %v238, %v240
    %v243 = vxor.u32 %v239, %v241
    %vm244 = vcmp.ge.u32.totalorder %v242, 1288490189
    %vm245 = vcmp.ge.u32.totalorder %v243, 1288490189
    %v246 = vsel %vm244, %v209, 0.0
    %v247 = vsel %vm245, %v210, 0.0
    %248 = vst [vmem:[#allocation4] sm:$0xff] %v246
    %249 = vst [vmem:[#allocation4 + $0x8] sm:$0xff] %v247
    // Predicated region
    $region22: #{tpu_custom_call.1} parent=1 // pred_check
      _
    $region23: #{tpu_custom_call.1} parent=1 // pred_check_branch
      %251 = sbr.rel (0) target = $region25
    $region24: #{tpu_custom_call.1} parent=1 // pred_region
      %s253 = ssub.s32 256, 256
      %254 = vsyncadd [#allocation5], %s253
      %s255 = sshll.u32 [#allocation4], 4
      %s256 = int_to_ptr.vmem [resolvable:$true] %s255
      %261 = dma.vmem_to_hbm [thread:$0]  %s256, 256, %s6, [#allocation5], 128, 128, 8
    $region25: #{tpu_custom_call.1} parent=1 // pred_fallthru
      _
    // Predicated region
    $region26: #{tpu_custom_call.1} parent=1 // pred_check
      _
    $region27: #{tpu_custom_call.1} parent=1 // pred_check_branch
      %263 = sbr.rel (0) target = $region29
    $region28: #{tpu_custom_call.1} parent=1 // pred_region
      %264 = dma.done [#allocation5], 256
    $region29: #{tpu_custom_call.1} parent=1 // pred_fallthru
      _
    %265 = vsyncpa [#allocation5], 1

</llo_original>
